<compile_context>
chip_gen: v7x
topology: tpu7x:2x2x1
jax: 0.10.0
libtpu: 0.0.40
codegen_flags: <defaults>
</compile_context>

<pallas_src>
import jax
import jax.numpy as jnp
from jax.experimental import pallas as pl
from jax.experimental.pallas import tpu as pltpu


def _round_up(x, m):
    return ((x + m - 1) // m) * m


def _cdiv(a, b):
    return (a + b - 1) // b


def _sublane(dtype):
    return {4: 8, 2: 16, 1: 32}.get(jnp.dtype(dtype).itemsize, 8)


def _vmem_block_bytes(rows, cols, dtype):
    """Approximate VMEM footprint of a (rows, cols) buffer after (sublane, 128) padding."""
    return (_round_up(max(int(rows), 1), _sublane(dtype))
            * _round_up(max(int(cols), 1), 128)
            * jnp.dtype(dtype).itemsize)


def _make_router_kernel(total_tokens, token_tile, compute_dtype):
    def kernel(x_ref, w1_ref, b1_ref, w2_ref, b2_ref, probs_ref, usage_ref):
        # Cast x to the MXU compute dtype in-register (no wrapper-side pass over x).
        x = x_ref[...].astype(compute_dtype)

        # h = relu(x @ W1 + b1)  -- f32 accumulation.
        h = jnp.dot(x, w1_ref[...], preferred_element_type=jnp.float32) + b1_ref[...]
        h = jnp.maximum(h, 0.0)

        # scores / temperature : 1/temperature pre-folded into W2 / b2.
        scores = jnp.dot(h.astype(w2_ref.dtype), w2_ref[...],
                         preferred_element_type=jnp.float32) + b2_ref[...]

        # Row softmax in f32; reciprocal on the EUP (approx) instead of a VALU divide.
        m = jnp.max(scores, axis=-1, keepdims=True)
        e = jnp.exp(scores - m)
        inv = pl.reciprocal(jnp.sum(e, axis=-1, keepdims=True), approx=True)
        probs = e * inv
        probs_ref[...] = probs.astype(probs_ref.dtype)

        # Fused partial usage sum; ragged / out-of-range rows are masked out so
        # garbage data in a partial last tile cannot bias the load-balance loss.
        row = (jax.lax.broadcasted_iota(jnp.int32, (token_tile, 1), 0)
               + pl.program_id(0) * token_tile)
        masked = jnp.where(row < total_tokens, probs, 0.0)
        partial = jnp.sum(masked, axis=0, keepdims=True)          # (1, E)
        usage_ref[...] = jnp.broadcast_to(partial, usage_ref.shape)  # (8, E) block

    return kernel


def glbl_mlp_router_forward(x, w1, b1, w2, b2, *, temperature=0.5, token_tile=512,
                            compute_dtype=jnp.bfloat16, probs_dtype=jnp.float32):
    """x: (B, S, D) -> (routing_probs (B, S, E) probs_dtype, load_balance_loss scalar f32)."""
    B, S, D = x.shape
    H = w1.shape[1]
    E = w2.shape[1]
    T = B * S

    x2d = x.reshape(T, D)  # metadata-only reshape; x stays in its incoming dtype.

    # Sublane multiple required by the HBM-blocked tensors (x tile and probs tile).
    sub = max(_sublane(x2d.dtype), _sublane(probs_dtype))
    tile = _round_up(max(sub, min(int(token_tile), _round_up(T, sub))), sub)
    # Ensure >= 2 grid steps when possible so "parallel" can shard across v7x cores.
    if T >= 2 * sub and _cdiv(T, tile) < 2:
        tile = _round_up(_cdiv(T, 2), sub)

    # Per-generation VMEM cap: 3/4 of physical per-core VMEM (fallback: v7x 64 MiB).
    try:
        phys = int(getattr(pltpu.get_tpu_info(), "vmem_capacity_bytes", 64 << 20))
    except Exception:
        phys = 64 << 20
    cap = phys * 3 // 4

    def needed(t):
        return (2 * _vmem_block_bytes(t, D, x2d.dtype)          # x tile (double-buffered)
                + 2 * _vmem_block_bytes(t, E, probs_dtype)      # probs tile (double-buffered)
                + 2 * _vmem_block_bytes(8, E, jnp.float32)      # usage tile (double-buffered)
                + _vmem_block_bytes(D, H, compute_dtype)        # resident weights (single copy)
                + _vmem_block_bytes(1, H, jnp.float32)
                + _vmem_block_bytes(H, E, compute_dtype)
                + _vmem_block_bytes(1, E, jnp.float32)
                + _vmem_block_bytes(t, D, compute_dtype)        # in-kernel x cast
                + 5 * _vmem_block_bytes(t, max(H, E), jnp.float32))  # h/scores/e/probs/mask

    while needed(tile) + (4 << 20) > cap and tile > sub:
        tile = max(sub, _round_up(tile // 2, sub))
    num_tiles = _cdiv(T, tile)
    vmem_limit = int(min(max(needed(tile) + (4 << 20), 32 << 20), cap))

    # Fold 1/temperature into the (tiny) second-layer weights/bias once.
    inv_temp = 1.0 / float(temperature)
    w1c = w1.astype(compute_dtype)
    b1c = b1.reshape(1, H).astype(jnp.float32)
    w2c = (w2.astype(jnp.float32) * inv_temp).astype(compute_dtype)
    b2c = b2.reshape(1, E).astype(jnp.float32) * inv_temp

    kernel = _make_router_kernel(T, tile, compute_dtype)

    x_bytes = jnp.dtype(x2d.dtype).itemsize
    w_bytes = jnp.dtype(compute_dtype).itemsize
    cost = pl.CostEstimate(
        flops=2 * T * (D * H + H * E),
        transcendentals=T * E,
        bytes_accessed=int(T * D * x_bytes
                           + T * E * jnp.dtype(probs_dtype).itemsize
                           + num_tiles * 8 * E * 4
                           + (D * H + H * E) * w_bytes + (H + E) * 4),
    )

    probs2d, usage_part = pl.pallas_call(
        kernel,
        out_shape=(jax.ShapeDtypeStruct((T, E), probs_dtype),
                   jax.ShapeDtypeStruct((num_tiles * 8, E), jnp.float32)),
        grid_spec=pltpu.PrefetchScalarGridSpec(
            num_scalar_prefetch=0,
            grid=(num_tiles,),
            in_specs=[
                pl.BlockSpec((tile, D), lambda i: (i, 0)),                 # x tile (pipelined)
                pl.BlockSpec(memory_space=pltpu.MemorySpace.VMEM),         # W1 resident, 1 buffer
                pl.BlockSpec(memory_space=pltpu.MemorySpace.VMEM),         # b1
                pl.BlockSpec(memory_space=pltpu.MemorySpace.VMEM),         # W2 (pre-scaled)
                pl.BlockSpec(memory_space=pltpu.MemorySpace.VMEM),         # b2 (pre-scaled)
            ],
            out_specs=[
                pl.BlockSpec((tile, E), lambda i: (i, 0)),                 # probs tile
                pl.BlockSpec((8, E), lambda i: (i, 0)),                    # usage partial sums
            ],
        ),
        compiler_params=pltpu.CompilerParams(
            # No cross-tile accumulator -> token axis is independent; v7x megacore
            # can shard it across its two TensorCores.
            dimension_semantics=("parallel",),
            vmem_limit_bytes=vmem_limit,
        ),
        cost_estimate=cost,
    )(x2d, w1c, b1c, w2c, b2c)

    routing_probs = probs2d.reshape(B, S, E)

    # Finish the tiny usage reduction (num_tiles x E values) + MSE loss in XLA.
    usage_sum = usage_part.reshape(num_tiles, 8, E)[:, 0, :].sum(axis=0)
    batch_usage = usage_sum / jnp.float32(T)
    load_balance_loss = jnp.mean((batch_usage - 1.0 / float(E)) ** 2)
    return routing_probs, load_balance_loss


def _reference_forward(x, w1, b1, w2, b2, temperature=0.5):
    h = jnp.maximum(x @ w1 + b1, 0.0)
    scores = h @ w2 + b2
    probs = jax.nn.softmax(scores / temperature, axis=-1)
    usage = probs.mean(axis=(0, 1))
    loss = jnp.mean((usage - 1.0 / usage.shape[0]) ** 2)
    return probs, loss


if __name__ == "__main__":
    temperature = 0.5
    keys = jax.random.split(jax.random.PRNGKey(0), 10)

    # ---- Small shapes consistent with the module: (batch, seq, d_model) = (2, 8, 32).
    batch, seq, d_model, num_experts = 2, 8, 32, 8
    hidden = d_model // 2
    x = jax.random.normal(keys[0], (batch, seq, d_model), dtype=jnp.float32)
    w1 = jax.random.normal(keys[1], (d_model, hidden), dtype=jnp.float32) * (1.0 / d_model ** 0.5)
    b1 = jax.random.normal(keys[2], (hidden,), dtype=jnp.float32) * 0.01
    w2 = jax.random.normal(keys[3], (hidden, num_experts), dtype=jnp.float32) * (1.0 / hidden ** 0.5)
    b2 = jax.random.normal(keys[4], (num_experts,), dtype=jnp.float32) * 0.01

    ref_probs, ref_loss = _reference_forward(x, w1, b1, w2, b2, temperature)

    # f32 compute path (matches the f32 module; only the approx reciprocal differs).
    probs_f32, loss_f32 = glbl_mlp_router_forward(
        x, w1, b1, w2, b2, temperature=temperature, compute_dtype=jnp.float32)
    probs_f32 = jax.block_until_ready(probs_f32)
    loss_f32 = jax.block_until_ready(loss_f32)
    assert probs_f32.shape == (batch, seq, num_experts)
    assert bool(jnp.all(jnp.isfinite(probs_f32)))
    assert jnp.allclose(jnp.sum(probs_f32, axis=-1), 1.0, atol=5e-3)
    assert jnp.allclose(probs_f32, ref_probs, atol=1e-2, rtol=1e-2)
    assert jnp.allclose(loss_f32, ref_loss, atol=1e-3)

    # bf16 MXU-operand path (softmax + usage stay f32).
    probs_bf16, loss_bf16 = glbl_mlp_router_forward(
        x, w1, b1, w2, b2, temperature=temperature, compute_dtype=jnp.bfloat16)
    probs_bf16 = jax.block_until_ready(probs_bf16)
    loss_bf16 = jax.block_until_ready(loss_bf16)
    assert probs_bf16.shape == (batch, seq, num_experts)
    assert jnp.allclose(probs_bf16, ref_probs, atol=8e-2)
    assert jnp.allclose(loss_bf16, ref_loss, atol=1e-2)

    # bf16 probs output (halves probs write bytes; f32 compute).
    probs_b16o, loss_b16o = glbl_mlp_router_forward(
        x, w1, b1, w2, b2, temperature=temperature,
        compute_dtype=jnp.float32, probs_dtype=jnp.bfloat16)
    probs_b16o = jax.block_until_ready(probs_b16o)
    loss_b16o = jax.block_until_ready(loss_b16o)
    assert probs_b16o.dtype == jnp.bfloat16
    assert jnp.allclose(probs_b16o.astype(jnp.float32), ref_probs, atol=2e-2)
    assert jnp.allclose(loss_b16o, ref_loss, atol=1e-3)

    # ---- Ragged token count + multi-tile grid (exercises masked usage fusion).
    batch2, seq2, d2, e2 = 3, 37, 64, 16
    h2 = d2 // 2
    x2 = jax.random.normal(keys[5], (batch2, seq2, d2), dtype=jnp.float32)
    w1b = jax.random.normal(keys[6], (d2, h2), dtype=jnp.float32) * (1.0 / d2 ** 0.5)
    b1b = jax.random.normal(keys[7], (h2,), dtype=jnp.float32) * 0.01
    w2b = jax.random.normal(keys[8], (h2, e2), dtype=jnp.float32) * (1.0 / h2 ** 0.5)
    b2b = jax.random.normal(keys[9], (e2,), dtype=jnp.float32) * 0.01

    ref_probs2, ref_loss2 = _reference_forward(x2, w1b, b1b, w2b, b2b, temperature)
    probs2, loss2 = glbl_mlp_router_forward(
        x2, w1b, b1b, w2b, b2b, temperature=temperature, compute_dtype=jnp.float32)
    probs2 = jax.block_until_ready(probs2)
    loss2 = jax.block_until_ready(loss2)
    assert probs2.shape == (batch2, seq2, e2)
    assert bool(jnp.all(jnp.isfinite(probs2)))
    assert jnp.allclose(probs2, ref_probs2, atol=1e-2, rtol=1e-2)
    assert jnp.allclose(loss2, ref_loss2, atol=5e-4)

    print("KERNEL_OK")
</pallas_src>

<mosaic_0001>
module attributes {stable_mosaic.version = 11 : i64} {
  func.func @kernel(%arg0: i32, %arg1: memref<8x32xf32, #tpu.memory_space<vmem>>, %arg2: memref<32x16xf32, #tpu.memory_space<vmem>>, %arg3: memref<1x16xf32, #tpu.memory_space<vmem>>, %arg4: memref<16x8xf32, #tpu.memory_space<vmem>>, %arg5: memref<1x8xf32, #tpu.memory_space<vmem>>, %arg6: memref<8x8xf32, #tpu.memory_space<vmem>>, %arg7: memref<8x8xf32, #tpu.memory_space<vmem>>) attributes {dimension_semantics = [#tpu.dimension_semantics<parallel>], iteration_bounds = array<i64: 2>, scalar_prefetch = 0 : i64, scratch_operands = 0 : i64, tpu.core_type = #tpu.core_type<tc>, window_params = [{transform_indices = @transform_0, window_bounds = array<i64: 8, 32>}, {pipeline_mode = #tpu.pipeline_mode<synchronous>, transform_indices = @transform_1, window_bounds = array<i64: 32, 16>}, {pipeline_mode = #tpu.pipeline_mode<synchronous>, transform_indices = @transform_2, window_bounds = array<i64: 1, 16>}, {pipeline_mode = #tpu.pipeline_mode<synchronous>, transform_indices = @transform_3, window_bounds = array<i64: 16, 8>}, {pipeline_mode = #tpu.pipeline_mode<synchronous>, transform_indices = @transform_4, window_bounds = array<i64: 1, 8>}, {transform_indices = @transform_5, window_bounds = array<i64: 8, 8>}, {transform_indices = @transform_6, window_bounds = array<i64: 8, 8>}]} {
    %c0 = arith.constant 0 : index
    %c0_0 = arith.constant 0 : index
    %0 = vector.load %arg1[%c0, %c0_0] : memref<8x32xf32, #tpu.memory_space<vmem>>, vector<8x32xf32>
    %c0_1 = arith.constant 0 : index
    %c0_2 = arith.constant 0 : index
    %1 = vector.load %arg2[%c0_1, %c0_2] : memref<32x16xf32, #tpu.memory_space<vmem>>, vector<32x16xf32>
    %cst = arith.constant dense<0.000000e+00> : vector<8x16xf32>
    %2 = tpu.matmul %0, %1, %cst {dimension_numbers = #tpu.dot_dimension_numbers<[1], [0], [0], [1], [0, 0, 1, 1], [], []>} : vector<8x32xf32>, vector<32x16xf32>, vector<8x16xf32> -> vector<8x16xf32>
    %c0_3 = arith.constant 0 : index
    %c0_4 = arith.constant 0 : index
    %3 = vector.load %arg3[%c0_3, %c0_4] : memref<1x16xf32, #tpu.memory_space<vmem>>, vector<1x16xf32>
    %4 = vector.broadcast %3 : vector<1x16xf32> to vector<8x16xf32>
    %5 = arith.addf %2, %4 : vector<8x16xf32>
    %cst_5 = arith.constant 0.000000e+00 : f32
    %6 = vector.broadcast %cst_5 : f32 to vector<8x16xf32>
    %7 = arith.maximumf %5, %6 : vector<8x16xf32>
    %c0_6 = arith.constant 0 : index
    %c0_7 = arith.constant 0 : index
    %8 = vector.load %arg4[%c0_6, %c0_7] : memref<16x8xf32, #tpu.memory_space<vmem>>, vector<16x8xf32>
    %cst_8 = arith.constant dense<0.000000e+00> : vector<8x8xf32>
    %9 = tpu.matmul %7, %8, %cst_8 {dimension_numbers = #tpu.dot_dimension_numbers<[1], [0], [0], [1], [0, 0, 1, 1], [], []>} : vector<8x16xf32>, vector<16x8xf32>, vector<8x8xf32> -> vector<8x8xf32>
    %c0_9 = arith.constant 0 : index
    %c0_10 = arith.constant 0 : index
    %10 = vector.load %arg5[%c0_9, %c0_10] : memref<1x8xf32, #tpu.memory_space<vmem>>, vector<1x8xf32>
    %11 = vector.broadcast %10 : vector<1x8xf32> to vector<8x8xf32>
    %12 = arith.addf %9, %11 : vector<8x8xf32>
    %cst_11 = arith.constant dense<0xFF800000> : vector<8xf32>
    %13 = vector.multi_reduction <maximumf>, %12, %cst_11 [1] : vector<8x8xf32> to vector<8xf32>
    %14 = vector.shape_cast %13 : vector<8xf32> to vector<8x1xf32>
    %15 = vector.broadcast %14 : vector<8x1xf32> to vector<8x8xf32>
    %16 = arith.subf %12, %15 : vector<8x8xf32>
    %17 = math.exp %16 : vector<8x8xf32>
    %cst_12 = arith.constant dense<0.000000e+00> : vector<8xf32>
    %18 = vector.multi_reduction <add>, %17, %cst_12 [1] : vector<8x8xf32> to vector<8xf32>
    %19 = vector.shape_cast %18 : vector<8xf32> to vector<8x1xf32>
    %20 = tpu.reciprocal %19 {approx = true} : vector<8x1xf32> -> vector<8x1xf32>
    %21 = vector.broadcast %20 : vector<8x1xf32> to vector<8x8xf32>
    %22 = arith.mulf %17, %21 : vector<8x8xf32>
    %c0_13 = arith.constant 0 : index
    %c0_14 = arith.constant 0 : index
    %23 = vector.load %arg6[%c0_13, %c0_14] : memref<8x8xf32, #tpu.memory_space<vmem>>, vector<8x8xf32>
    tpu.vector_store %arg6[%c0_13, %c0_14], %22 {strides = array<i32>} : memref<8x8xf32, #tpu.memory_space<vmem>>, vector<8x8xf32>,
    %24 = tpu.iota {dimensions = array<i32: 0>} : vector<8x1xi32>
    %c8_i32 = arith.constant 8 : i32
    %25 = arith.muli %arg0, %c8_i32 : i32
    %26 = vector.broadcast %25 : i32 to vector<8x1xi32>
    %27 = arith.addi %24, %26 : vector<8x1xi32>
    %c16_i32 = arith.constant 16 : i32
    %28 = vector.broadcast %c16_i32 : i32 to vector<8x1xi32>
    %29 = arith.cmpi slt, %27, %28 : vector<8x1xi32>
    %cst_15 = arith.constant 0.000000e+00 : f32
    %30 = vector.shape_cast %29 : vector<8x1xi1> to vector<8x1xi1>
    %31 = vector.broadcast %30 : vector<8x1xi1> to vector<8x8xi1>
    %32 = vector.broadcast %cst_15 : f32 to vector<8x8xf32>
    %33 = arith.select %31, %22, %32 : vector<8x8xi1>, vector<8x8xf32>
    %cst_16 = arith.constant dense<0.000000e+00> : vector<8xf32>
    %34 = vector.multi_reduction <add>, %33, %cst_16 [0] : vector<8x8xf32> to vector<8xf32>
    %35 = vector.shape_cast %34 : vector<8xf32> to vector<1x8xf32>
    %36 = vector.shape_cast %35 : vector<1x8xf32> to vector<1x8xf32>
    %37 = vector.broadcast %36 : vector<1x8xf32> to vector<8x8xf32>
    %c0_17 = arith.constant 0 : index
    %c0_18 = arith.constant 0 : index
    %38 = vector.load %arg7[%c0_17, %c0_18] : memref<8x8xf32, #tpu.memory_space<vmem>>, vector<8x8xf32>
    tpu.vector_store %arg7[%c0_17, %c0_18], %37 {strides = array<i32>} : memref<8x8xf32, #tpu.memory_space<vmem>>, vector<8x8xf32>,
    return
  }
  func.func @transform_0(%arg0: i32) -> (i32, i32) {
    %c0_i32 = arith.constant 0 : i32
    %c0_i32_0 = arith.constant 0 : i32
    return %arg0, %c0_i32 : i32, i32
  }
  func.func @transform_1(%arg0: i32) -> (i32, i32) {
    %c0_i32 = arith.constant 0 : i32
    %c0_i32_0 = arith.constant 0 : i32
    %c0_i32_1 = arith.constant 0 : i32
    return %c0_i32, %c0_i32_0 : i32, i32
  }
  func.func @transform_2(%arg0: i32) -> (i32, i32) {
    %c0_i32 = arith.constant 0 : i32
    %c0_i32_0 = arith.constant 0 : i32
    %c0_i32_1 = arith.constant 0 : i32
    return %c0_i32, %c0_i32_0 : i32, i32
  }
  func.func @transform_3(%arg0: i32) -> (i32, i32) {
    %c0_i32 = arith.constant 0 : i32
    %c0_i32_0 = arith.constant 0 : i32
    %c0_i32_1 = arith.constant 0 : i32
    return %c0_i32, %c0_i32_0 : i32, i32
  }
  func.func @transform_4(%arg0: i32) -> (i32, i32) {
    %c0_i32 = arith.constant 0 : i32
    %c0_i32_0 = arith.constant 0 : i32
    %c0_i32_1 = arith.constant 0 : i32
    return %c0_i32, %c0_i32_0 : i32, i32
  }
  func.func @transform_5(%arg0: i32) -> (i32, i32) {
    %c0_i32 = arith.constant 0 : i32
    %c0_i32_0 = arith.constant 0 : i32
    return %arg0, %c0_i32 : i32, i32
  }
  func.func @transform_6(%arg0: i32) -> (i32, i32) {
    %c0_i32 = arith.constant 0 : i32
    %c0_i32_0 = arith.constant 0 : i32
    return %arg0, %c0_i32 : i32, i32
  }
}

</mosaic_0001>

<llo_original>
// kernel: tpu_custom_call.1
$region0: #{tpu_custom_call.1}
  #allocation0 [shape = 'u32[]', space=smem, size = 0x4, offset = 0x4, fixed_abs, tag = 'smem constant byte address 0x4 - core index']
  #allocation1 [shape = 'u32[144,128]{1,0:T(1,128)}', space=vmem, size = 0x12000, scoped, tag = 'internal scratch']
  %s0 = inlined_call_operand.vmem [shape: f32[16,32], index: 0, kind: input, shape index: {}]
  %s1 = inlined_call_operand.vmem [shape: f32[32,16], index: 1, kind: input, shape index: {}]
  %s2 = inlined_call_operand.vmem [shape: f32[1,16], index: 2, kind: input, shape index: {}]
  %s3 = inlined_call_operand.vmem [shape: f32[16,8], index: 3, kind: input, shape index: {}]
  %s4 = inlined_call_operand.vmem [shape: f32[1,8], index: 4, kind: input, shape index: {}]
  %s5 = inlined_call_operand.vmem [shape: f32[16,8], index: 5, kind: output, shape index: {0}]
  %s6 = inlined_call_operand.vmem [shape: f32[16,8], index: 6, kind: output, shape index: {1}]
  %7 = xla_tuple %s5, %s6
  %s8 = sld [smem:[#allocation0]]
  $region61: #{tpu_custom_call.1} parent=0
    _
  %s10 = ssub.s32 1, %s8
  %s11 = scalar_select 0, %s10, %s8
  loop: start=0, step=1, limit=4
  $region2: #{tpu_custom_call.1} parent=0 // loop_pre_header
    _
  $region3: #{tpu_custom_call.1} parent=0 // loop_header
    %s13 = sphi 0, %s17
    %p14 = scmp.ge.s32.totalorder %s13, 4
    %s23 = sphi 0, %s25
    %s26 = sphi 0, %s23
    %s27 = sphi 0, %s26
    %s43 = sphi 0, %s27
    %s47 = sphi 0, %s47
    %s49 = sphi 0, %s47
    %s50 = sphi 0, %s49
    %s64 = sphi 0, %s50
    %s68 = sphi 0, %s68
    %s70 = sphi 0, %s68
    %s71 = sphi 0, %s70
    %s85 = sphi 0, %s71
    %s89 = sphi 0, %s89
    %s91 = sphi 0, %s89
    %s92 = sphi 0, %s91
    %s106 = sphi 0, %s92
    %s110 = sphi 0, %s110
    %s112 = sphi 0, %s110
    %s113 = sphi 0, %s112
    %s127 = sphi 0, %s113
    %s133 = sphi 0, %s135
    %s136 = sphi 0, %s133
    %s137 = sphi 0, %s136
    %s153 = sphi 0, %s137
    %s159 = sphi 0, %s161
    %s162 = sphi 0, %s159
    %s163 = sphi 0, %s162
    %s179 = sphi 0, %s163
  $region4: #{tpu_custom_call.1} parent=0 // loop_header_branch
    %16 = sbr.rel (%p14) target = $region8
  $region5: #{tpu_custom_call.1} parent=0 // loop_body
    %s18 = ssub.s32 %s13, 1
    %s19 = ssub.s32 %s13, 2
    %s20 = sadd.s32 %s13, 1
    %s21 = ssub.s32 %s13, %s20
    %p22 = scmp.eq.s32.totalorder %s21, 0
    %s24 = sadd.s32 %s23, 1
    %s25 = scalar_select %p22, %s23, %s24
    %p28 = pneg %p22
    %p29 = scmp.eq.s32.totalorder %s13, 1
    %p30 = por %p28, %p29
    %p31 = scmp.ne.s32.totalorder %s23, %s26
    %p32 = scmp.eq.s32.totalorder %s13, 0
    %p33 = por %p31, %p32
    %p34 = scmp.ne.s32.totalorder %s23, %s26
    %p35 = scmp.eq.s32.totalorder %s18, 1
    %p36 = por %p34, %p35
    %p37 = scmp.ne.s32.totalorder %s26, %s27
    %p38 = scmp.eq.s32.totalorder %s18, 0
    %p39 = por %p37, %p38
    %p40 = scmp.ne.s32.totalorder %s26, %s27
    %p41 = scmp.eq.s32.totalorder %s19, 1
    %p42 = por %p40, %p41
    %p44 = scmp.ne.s32.totalorder %s27, %s43
    %p45 = scmp.eq.s32.totalorder %s19, 0
    %p46 = por %p44, %p45
    %s48 = sadd.s32 %s47, 1
    %p51 = scmp.eq.s32.totalorder %s13, 1
    %p52 = scmp.ne.s32.totalorder %s47, %s49
    %p53 = scmp.eq.s32.totalorder %s13, 0
    %p54 = por %p52, %p53
    %p55 = scmp.ne.s32.totalorder %s47, %s49
    %p56 = scmp.eq.s32.totalorder %s18, 1
    %p57 = por %p55, %p56
    %p58 = scmp.ne.s32.totalorder %s49, %s50
    %p59 = scmp.eq.s32.totalorder %s18, 0
    %p60 = por %p58, %p59
    %p61 = scmp.ne.s32.totalorder %s49, %s50
    %p62 = scmp.eq.s32.totalorder %s19, 1
    %p63 = por %p61, %p62
    %p65 = scmp.ne.s32.totalorder %s50, %s64
    %p66 = scmp.eq.s32.totalorder %s19, 0
    %p67 = por %p65, %p66
    %s69 = sadd.s32 %s68, 1
    %p72 = scmp.eq.s32.totalorder %s13, 1
    %p73 = scmp.ne.s32.totalorder %s68, %s70
    %p74 = scmp.eq.s32.totalorder %s13, 0
    %p75 = por %p73, %p74
    %p76 = scmp.ne.s32.totalorder %s68, %s70
    %p77 = scmp.eq.s32.totalorder %s18, 1
    %p78 = por %p76, %p77
    %p79 = scmp.ne.s32.totalorder %s70, %s71
    %p80 = scmp.eq.s32.totalorder %s18, 0
    %p81 = por %p79, %p80
    %p82 = scmp.ne.s32.totalorder %s70, %s71
    %p83 = scmp.eq.s32.totalorder %s19, 1
    %p84 = por %p82, %p83
    %p86 = scmp.ne.s32.totalorder %s71, %s85
    %p87 = scmp.eq.s32.totalorder %s19, 0
    %p88 = por %p86, %p87
    %s90 = sadd.s32 %s89, 1
    %p93 = scmp.eq.s32.totalorder %s13, 1
    %p94 = scmp.ne.s32.totalorder %s89, %s91
    %p95 = scmp.eq.s32.totalorder %s13, 0
    %p96 = por %p94, %p95
    %p97 = scmp.ne.s32.totalorder %s89, %s91
    %p98 = scmp.eq.s32.totalorder %s18, 1
    %p99 = por %p97, %p98
    %p100 = scmp.ne.s32.totalorder %s91, %s92
    %p101 = scmp.eq.s32.totalorder %s18, 0
    %p102 = por %p100, %p101
    %p103 = scmp.ne.s32.totalorder %s91, %s92
    %p104 = scmp.eq.s32.totalorder %s19, 1
    %p105 = por %p103, %p104
    %p107 = scmp.ne.s32.totalorder %s92, %s106
    %p108 = scmp.eq.s32.totalorder %s19, 0
    %p109 = por %p107, %p108
    %s111 = sadd.s32 %s110, 1
    %p114 = scmp.eq.s32.totalorder %s13, 1
    %p115 = scmp.ne.s32.totalorder %s110, %s112
    %p116 = scmp.eq.s32.totalorder %s13, 0
    %p117 = por %p115, %p116
    %p118 = scmp.ne.s32.totalorder %s110, %s112
    %p119 = scmp.eq.s32.totalorder %s18, 1
    %p120 = por %p118, %p119
    %p121 = scmp.ne.s32.totalorder %s112, %s113
    %p122 = scmp.eq.s32.totalorder %s18, 0
    %p123 = por %p121, %p122
    %p124 = scmp.ne.s32.totalorder %s112, %s113
    %p125 = scmp.eq.s32.totalorder %s19, 1
    %p126 = por %p124, %p125
    %p128 = scmp.ne.s32.totalorder %s113, %s127
    %p129 = scmp.eq.s32.totalorder %s19, 0
    %p130 = por %p128, %p129
    %s131 = ssub.s32 %s13, %s20
    %p132 = scmp.eq.s32.totalorder %s131, 0
    %s134 = sadd.s32 %s133, 1
    %s135 = scalar_select %p132, %s133, %s134
    %p138 = pneg %p132
    %p139 = scmp.eq.s32.totalorder %s13, 1
    %p140 = por %p138, %p139
    %p141 = scmp.ne.s32.totalorder %s133, %s136
    %p142 = scmp.eq.s32.totalorder %s13, 0
    %p143 = por %p141, %p142
    %p144 = scmp.ne.s32.totalorder %s133, %s136
    %p145 = scmp.eq.s32.totalorder %s18, 1
    %p146 = por %p144, %p145
    %p147 = scmp.ne.s32.totalorder %s136, %s137
    %p148 = scmp.eq.s32.totalorder %s18, 0
    %p149 = por %p147, %p148
    %p150 = scmp.ne.s32.totalorder %s136, %s137
    %p151 = scmp.eq.s32.totalorder %s19, 1
    %p152 = por %p150, %p151
    %p154 = scmp.ne.s32.totalorder %s137, %s153
    %p155 = scmp.eq.s32.totalorder %s19, 0
    %p156 = por %p154, %p155
    %s157 = ssub.s32 %s13, %s20
    %p158 = scmp.eq.s32.totalorder %s157, 0
    %s160 = sadd.s32 %s159, 1
    %s161 = scalar_select %p158, %s159, %s160
    %p164 = pneg %p158
    %p165 = scmp.eq.s32.totalorder %s13, 1
    %p166 = por %p164, %p165
    %p167 = scmp.ne.s32.totalorder %s159, %s162
    %p168 = scmp.eq.s32.totalorder %s13, 0
    %p169 = por %p167, %p168
    %p170 = scmp.ne.s32.totalorder %s159, %s162
    %p171 = scmp.eq.s32.totalorder %s18, 1
    %p172 = por %p170, %p171
    %p173 = scmp.ne.s32.totalorder %s162, %s163
    %p174 = scmp.eq.s32.totalorder %s18, 0
    %p175 = por %p173, %p174
    %p176 = scmp.ne.s32.totalorder %s162, %s163
    %p177 = scmp.eq.s32.totalorder %s19, 1
    %p178 = por %p176, %p177
    %p180 = scmp.ne.s32.totalorder %s163, %s179
    %p181 = scmp.eq.s32.totalorder %s19, 0
    %p182 = por %p180, %p181
    %p183 = scmp.le.s32.totalorder 1, %s13
    %p184 = scmp.lt.s32.totalorder %s13, 3
    %p185 = pnand %p183, %p184
    %p186 = pneg %p185
    // Predicated region
    $region9: #{tpu_custom_call.1} parent=5 // pred_check
      _
    $region10: #{tpu_custom_call.1} parent=5 // pred_check_branch
      %188 = sbr.rel (%p185) target = $region12
    $region11: #{tpu_custom_call.1} parent=5 // pred_region
      %s189 = ssub.s32 %s13, 1
      // Predicated region
      $region13: #{tpu_custom_call.1} parent=11 // pred_check
        %p190 = pneg %p60
      $region14: #{tpu_custom_call.1} parent=11 // pred_check_branch
        %192 = sbr.rel (%p190) target = $region16
      $region15: #{tpu_custom_call.1} parent=11 // pred_region
        _
      $region16: #{tpu_custom_call.1} parent=11 // pred_fallthru
        _
      // Predicated region
      $region17: #{tpu_custom_call.1} parent=11 // pred_check
        %p193 = pneg %p81
      $region18: #{tpu_custom_call.1} parent=11 // pred_check_branch
        %195 = sbr.rel (%p193) target = $region20
      $region19: #{tpu_custom_call.1} parent=11 // pred_region
        _
      $region20: #{tpu_custom_call.1} parent=11 // pred_fallthru
        _
      // Predicated region
      $region21: #{tpu_custom_call.1} parent=11 // pred_check
        %p196 = pneg %p102
      $region22: #{tpu_custom_call.1} parent=11 // pred_check_branch
        %198 = sbr.rel (%p196) target = $region24
      $region23: #{tpu_custom_call.1} parent=11 // pred_region
        _
      $region24: #{tpu_custom_call.1} parent=11 // pred_fallthru
        _
      // Predicated region
      $region25: #{tpu_custom_call.1} parent=11 // pred_check
        %p199 = pneg %p123
      $region26: #{tpu_custom_call.1} parent=11 // pred_check_branch
        %201 = sbr.rel (%p199) target = $region28
      $region27: #{tpu_custom_call.1} parent=11 // pred_region
        _
      $region28: #{tpu_custom_call.1} parent=11 // pred_fallthru
        _
    $region12: #{tpu_custom_call.1} parent=5 // pred_fallthru
      _
    %p202 = scmp.lt.s32.totalorder %s13, 2
    // Predicated region
    $region29: #{tpu_custom_call.1} parent=5 // pred_check
      %p203 = pneg %p202
    $region30: #{tpu_custom_call.1} parent=5 // pred_check_branch
      %205 = sbr.rel (%p203) target = $region32
    $region31: #{tpu_custom_call.1} parent=5 // pred_region
      // Predicated region
      $region33: #{tpu_custom_call.1} parent=31 // pred_check
        %p206 = pneg %p33
      $region34: #{tpu_custom_call.1} parent=31 // pred_check_branch
        %208 = sbr.rel (%p206) target = $region36
      $region35: #{tpu_custom_call.1} parent=31 // pred_region
        %p209 = scmp.lt.s32.totalorder %s13, 1
        %s210 = scalar_select %p209, %s13, 1
        %s211 = smul.addr %s210, 8
        %s212 = scalar_lea.vmem %s0, %s211
      $region36: #{tpu_custom_call.1} parent=31 // pred_fallthru
        _
    $region32: #{tpu_custom_call.1} parent=5 // pred_fallthru
      _
    %p213 = scmp.le.s32.totalorder 1, %s13
    %p214 = scmp.lt.s32.totalorder %s13, 3
    %p215 = pnand %p213, %p214
    %p216 = pneg %p215
    // Predicated region
    $region37: #{tpu_custom_call.1} parent=5 // pred_check
      _
    $region38: #{tpu_custom_call.1} parent=5 // pred_check_branch
      %218 = sbr.rel (%p215) target = $region40
    $region39: #{tpu_custom_call.1} parent=5 // pred_region
      %s219 = ssub.s32 %s13, 1
      %p220 = scmp.lt.s32.totalorder %s18, 1
      %s221 = scalar_select %p220, %s18, 1
      %s222 = smul.addr %s221, 8
      %s223 = scalar_lea.vmem %s0, %s222
      %p224 = pneg %p39
      %p225 = pneg %p36
      %p226 = pneg %p60
      %p227 = pneg %p57
      %p228 = pneg %p81
      %p229 = pneg %p78
      %p230 = pneg %p102
      %p231 = pneg %p99
      %p232 = pneg %p123
      %p233 = pneg %p120
      %p234 = pneg %p149
      %p235 = pneg %p146
      %p236 = scmp.lt.s32.totalorder %s18, 1
      %s237 = scalar_select %p236, %s18, 1
      %s238 = smul.addr %s237, 8
      %s239 = scalar_lea.vmem %s5, %s238
      %p240 = pneg %p175
      %p241 = pneg %p172
      %p242 = scmp.lt.s32.totalorder %s18, 1
      %s243 = scalar_select %p242, %s18, 1
      %s244 = smul.addr %s243, 8
      %s245 = scalar_lea.vmem %s6, %s244
      %p246 = scmp.lt.s32.totalorder %s18, 1
      %s247 = scalar_select %p246, %s18, 1
      %s248 = smul.addr %s247, 8
      %s249 = scalar_lea.vmem %s0, %s248
      %p250 = scmp.lt.s32.totalorder %s18, 1
      %s251 = scalar_select %p250, %s18, 1
      %s252 = smul.addr %s251, 8
      %s253 = scalar_lea.vmem %s5, %s252
      %p254 = scmp.lt.s32.totalorder %s18, 1
      %s255 = scalar_select %p254, %s18, 1
      %s256 = smul.addr %s255, 8
      %s257 = scalar_lea.vmem %s6, %s256
      %v258 = vld [vmem:[%s249] sm:$0xff]
      %v259 = vld [vmem:[%s1] sm:$0xff]
      %v260 = vld [vmem:[%s1 + $0x8] sm:$0xff]
      %v261 = vld [vmem:[%s1 + $0x10] sm:$0xff]
      %v262 = vld [vmem:[%s1 + $0x18] sm:$0xff]
      %v263 = vld [vmem:[%s2] sm:$0x1]
      %v265 = vlaneseq
      %v266 = vshrl.u32 %v265, 7
      %v267 = vsub.s32 0, %v266
      %v268 = vrot.slane %v263, %v267
      %vm270 = vcmask 261120
      %v272 = vsel %vm270, %v258, 0
      %274 = vmatprep.subr.mxu0 0.0
      %275 = vmatpush1.msra.mxu0 %v259
      %276 = vmatprep.subr.mxu0 0.0
      %277 = vmatpush1.msra.mxu0 %v260
      %278 = vmatprep.subr.mxu0 0.0
      %279 = vmatpush1.msra.mxu0 %v261
      %280 = vmatprep.subr.mxu0 0.0
      %281 = vmatpush1.msra.mxu0 %v262
      %282 = vmatprep.subr.mxu0 0.0
      %283 = vmatpush1.msra.mxu0 0.0
      %284 = vmatprep.subr.mxu0 0.0
      %285 = vmatpush1.msra.mxu0 0.0
      %286 = vmatprep.subr.mxu0 0.0
      %287 = vmatpush1.msra.mxu0 0.0
      %288 = vmatprep.subr.mxu0 0.0
      %289 = vmatpush1.msra.mxu0 0.0
      %290 = vmatprep.subr.mxu0 0.0
      %291 = vmatpush1.msra.mxu0 0.0
      %292 = vmatprep.subr.mxu0 0.0
      %293 = vmatpush1.msra.mxu0 0.0
      %294 = vmatprep.subr.mxu0 0.0
      %295 = vmatpush1.msra.mxu0 0.0
      %296 = vmatprep.subr.mxu0 0.0
      %297 = vmatpush1.msra.mxu0 0.0
      %298 = vmatprep.subr.mxu0 0.0
      %299 = vmatpush1.msra.mxu0 0.0
      %300 = vmatprep.subr.mxu0 0.0
      %301 = vmatpush1.msra.mxu0 0.0
      %302 = vmatprep.subr.mxu0 0.0
      %303 = vmatpush1.msra.mxu0 0.0
      %304 = vmatprep.subr.mxu0 0.0
      %305 = vmatpush1.msra.mxu0 0.0
      %306 = vmatprep.subr.mxu0 0.0
      %307 = vmatpush1.msra.mxu0 0.0
      %308 = vmatprep.subr.mxu0 0.0
      %309 = vmatpush1.msra.mxu0 0.0
      %310 = vmatprep.subr.mxu0 0.0
      %311 = vmatpush1.msra.mxu0 0.0
      %312 = vmatprep.subr.mxu0 0.0
      %313 = vmatpush1.msra.mxu0 0.0
      %314 = vmatprep.subr.mxu0 0.0
      %315 = vmatpush1.msra.mxu0 0.0
      %316 = vmatprep.subr.mxu0 0.0
      %317 = vmatpush1.msra.mxu0 0.0
      %318 = vmatprep.subr.mxu0 0.0
      %319 = vmatpush1.msra.mxu0 0.0
      %320 = vmatprep.subr.mxu0 0.0
      %321 = vmatpush1.msra.mxu0 0.0
      %322 = vmatprep.subr.mxu0 0.0
      %323 = vmatpush1.msra.mxu0 0.0
      %324 = vmatprep.subr.mxu0 0.0
      %325 = vmatpush1.msra.mxu0 0.0
      %326 = vmatprep.subr.mxu0 0.0
      %327 = vmatpush1.msra.mxu0 0.0
      %328 = vmatprep.subr.mxu0 0.0
      %329 = vmatpush1.msra.mxu0 0.0
      %330 = vmatprep.subr.mxu0 0.0
      %331 = vmatpush1.msra.mxu0 0.0
      %332 = vmatprep.subr.mxu0 0.0
      %333 = vmatpush1.msra.mxu0 0.0
      %334 = vmatprep.subr.mxu0 0.0
      %335 = vmatpush1.msra.mxu0 0.0
      %336 = vmatprep.subr.mxu0 0.0
      %337 = vmatpush1.msra.mxu0 0.0
      %338 = vmatprep.mubr.f32.mxu0 0.0
      %339 = vmatmul.mubr.f32.gmra.mrb[0].mxu0 %v272
      %v340 = vpop.f32.mrb[0].mxu0
      %v341 = vadd.f32 %v268, %v340
      %v342 = vpop.f32.mrb[0].mxu0
      %343 = vdwg.mxu0
      %v344 = vmax.f32 %v341, 0.0
      %v345 = vld [vmem:[%s3] sm:$0xff]
      %v346 = vld [vmem:[%s3 + $0x8] sm:$0xff]
      %v347 = vld [vmem:[%s4] sm:$0x1]
      %v349 = vlaneseq
      %v350 = vshrl.u32 %v349, 7
      %v351 = vsub.s32 0, %v350
      %v352 = vrot.slane %v347, %v351
      %vm354 = vcmask 130048
      %v356 = vsel %vm354, %v344, 0
      %358 = vmatprep.subr.mxu0 0.0
      %359 = vmatpush1.msra.mxu0 %v345
      %360 = vmatprep.subr.mxu0 0.0
      %361 = vmatpush1.msra.mxu0 %v346
      %362 = vmatprep.subr.mxu0 0.0
      %363 = vmatpush1.msra.mxu0 0.0
      %364 = vmatprep.subr.mxu0 0.0
      %365 = vmatpush1.msra.mxu0 0.0
      %366 = vmatprep.subr.mxu0 0.0
      %367 = vmatpush1.msra.mxu0 0.0
      %368 = vmatprep.subr.mxu0 0.0
      %369 = vmatpush1.msra.mxu0 0.0
      %370 = vmatprep.subr.mxu0 0.0
      %371 = vmatpush1.msra.mxu0 0.0
      %372 = vmatprep.subr.mxu0 0.0
      %373 = vmatpush1.msra.mxu0 0.0
      %374 = vmatprep.subr.mxu0 0.0
      %375 = vmatpush1.msra.mxu0 0.0
      %376 = vmatprep.subr.mxu0 0.0
      %377 = vmatpush1.msra.mxu0 0.0
      %378 = vmatprep.subr.mxu0 0.0
      %379 = vmatpush1.msra.mxu0 0.0
      %380 = vmatprep.subr.mxu0 0.0
      %381 = vmatpush1.msra.mxu0 0.0
      %382 = vmatprep.subr.mxu0 0.0
      %383 = vmatpush1.msra.mxu0 0.0
      %384 = vmatprep.subr.mxu0 0.0
      %385 = vmatpush1.msra.mxu0 0.0
      %386 = vmatprep.subr.mxu0 0.0
      %387 = vmatpush1.msra.mxu0 0.0
      %388 = vmatprep.subr.mxu0 0.0
      %389 = vmatpush1.msra.mxu0 0.0
      %390 = vmatprep.subr.mxu0 0.0
      %391 = vmatpush1.msra.mxu0 0.0
      %392 = vmatprep.subr.mxu0 0.0
      %393 = vmatpush1.msra.mxu0 0.0
      %394 = vmatprep.subr.mxu0 0.0
      %395 = vmatpush1.msra.mxu0 0.0
      %396 = vmatprep.subr.mxu0 0.0
      %397 = vmatpush1.msra.mxu0 0.0
      %398 = vmatprep.subr.mxu0 0.0
      %399 = vmatpush1.msra.mxu0 0.0
      %400 = vmatprep.subr.mxu0 0.0
      %401 = vmatpush1.msra.mxu0 0.0
      %402 = vmatprep.subr.mxu0 0.0
      %403 = vmatpush1.msra.mxu0 0.0
      %404 = vmatprep.subr.mxu0 0.0
      %405 = vmatpush1.msra.mxu0 0.0
      %406 = vmatprep.subr.mxu0 0.0
      %407 = vmatpush1.msra.mxu0 0.0
      %408 = vmatprep.subr.mxu0 0.0
      %409 = vmatpush1.msra.mxu0 0.0
      %410 = vmatprep.subr.mxu0 0.0
      %411 = vmatpush1.msra.mxu0 0.0
      %412 = vmatprep.subr.mxu0 0.0
      %413 = vmatpush1.msra.mxu0 0.0
      %414 = vmatprep.subr.mxu0 0.0
      %415 = vmatpush1.msra.mxu0 0.0
      %416 = vmatprep.subr.mxu0 0.0
      %417 = vmatpush1.msra.mxu0 0.0
      %418 = vmatprep.subr.mxu0 0.0
      %419 = vmatpush1.msra.mxu0 0.0
      %420 = vmatprep.subr.mxu0 0.0
      %421 = vmatpush1.msra.mxu0 0.0
      %422 = vmatprep.mubr.f32.mxu0 0.0
      %423 = vmatmul.mubr.f32.gmra.mrb[0].mxu0 %v356
      %v424 = vpop.f32.mrb[0].mxu0
      %v425 = vadd.f32 %v352, %v424
      %v426 = vpop.f32.mrb[0].mxu0
      %427 = vdwg.mxu0
      %vm428 = vcmask 64512
      %v429 = vsel %vm428, %v425, -inf
      %430 = vmax.xlane.f32.xlu0 %v429
      %v431 = vpop.xlane.xlu0 %430
      %v432 = vsub.f32 %v425, %v431
      %v433 = vmul.f32 %v432, 1.442695
      %v434 = vpow.pop %v433
      %v435 = vsel %vm428, %v434, 0.0
      %436 = vadd.xlane.f32.xlu0 %v435
      %v437 = vpop.xlane.xlu0 %436
      %v438 = vrcp.pop %v437
      %v439 = vmul.f32 %v434, %v438
      %440 = vst.msk [vmem:[%s253] sm:$0xff] %vm428, %v439
      %v441 = vlaneseq
      %v442 = vshrl.u32 %v441, 7
      %s443 = smul.u32 %s18, 8
      %v444 = vstv %s443
      %v445 = vadd.s32 %v442, %v444
      %vm446 = vcmp.lt.s32.totalorder %v445, 16
      %v447 = vsel %vm446, 1, 0
      %vm448 = vcmp.eq.s32.totalorder %v447, 1
      %v449 = vsel %vm448, %v439, 0.0
      %v450 = vsel %vm428, %v449, 0.0
      %v451 = vrot.slane %v450, 4
      %v452 = vadd.f32 %v450, %v451
      %v453 = vrot.slane %v452, 2
      %v454 = vadd.f32 %v452, %v453
      %v455 = vrot.slane %v454, 1
      %v456 = vadd.f32 %v454, %v455
      %457 = vst.msk [vmem:[%s257] sm:$0xff] %vm428, %v456
      %p458 = scmp.lt.s32.totalorder %s18, 1
      %s459 = scalar_select %p458, %s18, 1
      %s460 = smul.addr %s459, 8
      %s461 = scalar_lea.vmem %s5, %s460
      %p462 = scmp.lt.s32.totalorder %s18, 1
      %s463 = scalar_select %p462, %s18, 1
      %s464 = smul.addr %s463, 8
      %s465 = scalar_lea.vmem %s6, %s464
      // Predicated region
      $region41: #{tpu_custom_call.1} parent=39 // pred_check
        %p466 = pneg %p146
      $region42: #{tpu_custom_call.1} parent=39 // pred_check_branch
        %468 = sbr.rel (%p466) target = $region44
      $region43: #{tpu_custom_call.1} parent=39 // pred_region
        _
      $region44: #{tpu_custom_call.1} parent=39 // pred_fallthru
        _
      // Predicated region
      $region45: #{tpu_custom_call.1} parent=39 // pred_check
        %p469 = pneg %p172
      $region46: #{tpu_custom_call.1} parent=39 // pred_check_branch
        %471 = sbr.rel (%p469) target = $region48
      $region47: #{tpu_custom_call.1} parent=39 // pred_region
        _
      $region48: #{tpu_custom_call.1} parent=39 // pred_fallthru
        _
    $region40: #{tpu_custom_call.1} parent=5 // pred_fallthru
      _
    %p472 = scmp.le.s32.totalorder 2, %s13
    // Predicated region
    $region49: #{tpu_custom_call.1} parent=5 // pred_check
      %p473 = pneg %p472
    $region50: #{tpu_custom_call.1} parent=5 // pred_check_branch
      %475 = sbr.rel (%p473) target = $region52
    $region51: #{tpu_custom_call.1} parent=5 // pred_region
      %s476 = ssub.s32 %s13, 2
      // Predicated region
      $region53: #{tpu_custom_call.1} parent=51 // pred_check
        %p477 = pneg %p152
      $region54: #{tpu_custom_call.1} parent=51 // pred_check_branch
        %479 = sbr.rel (%p477) target = $region56
      $region55: #{tpu_custom_call.1} parent=51 // pred_region
        %p480 = scmp.lt.s32.totalorder %s19, 1
        %s481 = scalar_select %p480, %s19, 1
        %s482 = smul.addr %s481, 8
        %s483 = scalar_lea.vmem %s5, %s482
      $region56: #{tpu_custom_call.1} parent=51 // pred_fallthru
        _
      // Predicated region
      $region57: #{tpu_custom_call.1} parent=51 // pred_check
        %p484 = pneg %p178
      $region58: #{tpu_custom_call.1} parent=51 // pred_check_branch
        %486 = sbr.rel (%p484) target = $region60
      $region59: #{tpu_custom_call.1} parent=51 // pred_region
        %p487 = scmp.lt.s32.totalorder %s19, 1
        %s488 = scalar_select %p487, %s19, 1
        %s489 = smul.addr %s488, 8
        %s490 = scalar_lea.vmem %s6, %s489
      $region60: #{tpu_custom_call.1} parent=51 // pred_fallthru
        _
    $region52: #{tpu_custom_call.1} parent=5 // pred_fallthru
      _
  $region6: #{tpu_custom_call.1} parent=0 // loop_footer
    %s17 = sadd.s32 1, %s13
  $region7: #{tpu_custom_call.1} parent=0 // loop_footer_branch
    %12 = sbr.rel target = $region3
  $region8: #{tpu_custom_call.1} parent=0 // loop_exit
    _

</llo_original>
